<compile_context>
chip_gen: v5e
topology: v5e:2x2
jax: 0.10.0
libtpu: 0.0.40
codegen_flags: <defaults>
</compile_context>

<pallas_src>
import jax
import jax.numpy as jnp
from jax.experimental import pallas as pl
from jax.experimental.pallas import tpu as pltpu


_HAS_BUFFERED = hasattr(pl, "Buffered")


def _block_spec(block_shape, index_map, single_buffer=False):
    """BlockSpec, optionally single-buffered (for constant-index VMEM-resident blocks)."""
    if single_buffer and _HAS_BUFFERED:
        try:
            return pl.BlockSpec(block_shape, index_map, pipeline_mode=pl.Buffered(1))
        except Exception:  # pipeline_mode / Buffered(1) unsupported in this jax version
            pass
    return pl.BlockSpec(block_shape, index_map)


def _vmem_capacity_bytes():
    try:
        return int(pltpu.get_tpu_info().vmem_capacity_bytes)
    except Exception:
        return 64 << 20  # conservative: v7x per-TensorCore VMEM


def clip_embedding(tokens, emb_table, pos_emb, *, path=None):
    """tokens: [B, S] int; emb_table: [V, E]; pos_emb: [S, E] -> [B, S, E]."""
    B, S = tokens.shape
    V, E = emb_table.shape
    assert pos_emb.shape == (S, E)

    out_dtype = emb_table.dtype
    itemsize = jnp.dtype(out_dtype).itemsize

    # Lane-dense output: pad E up to a multiple of 128 (sub-128 last dim lowers to masked
    # vst.msk partial stores).  Real CLIP E = 512 / 768 never pads; the toy E=32 does.
    E_pad = ((E + 127) // 128) * 128
    if E_pad != E:
        emb_table = jnp.pad(emb_table, ((0, 0), (0, E_pad - E)))
        pos_emb = jnp.pad(pos_emb, ((0, 0), (0, E_pad - E)))
    pos_emb = pos_emb.astype(out_dtype)
    tokens = tokens.astype(jnp.int32)

    vmem_cap = _vmem_capacity_bytes()
    table_bytes = V * E_pad * itemsize
    tile_bytes = S * E_pad * itemsize
    # Resident working set: table (1 buf) + pos (1 buf) + out (2 bufs) + one-hot / f32 temps.
    resident_bytes = table_bytes + 3 * tile_bytes + V * S * 4 + 2 * S * E_pad * 4
    fits_vmem = resident_bytes <= int(0.6 * vmem_cap)
    high_reuse = V <= max(8192, 8 * B * S)  # else streaming the whole table wastes HBM BW
    if path is None:
        path = "resident" if (fits_vmem and high_reuse) else "hbm"

    def _cparams(work_bytes):
        return pltpu.CompilerParams(
            dimension_semantics=("parallel",),
            vmem_limit_bytes=int(min(0.9 * vmem_cap, max(32 << 20, work_bytes + (4 << 20)))),
        )

    out_shape = jax.ShapeDtypeStruct((B, S, E_pad), out_dtype)

    if path == "resident":
        # -------- VMEM-resident table, one-hot MXU gather, fused add+store ----------
        tokens_col = tokens.reshape(B, S, 1)  # ids along sublanes -> no in-kernel transpose

        def kernel(tok_ref, pos_ref, emb_ref, out_ref):
            # tok_ref: (S, 1) int32; pos_ref: (S, E_pad); emb_ref: (V, E_pad); out_ref: (S, E_pad)
            ids = tok_ref[...]                                        # (S, 1)
            col = jax.lax.broadcasted_iota(jnp.int32, (S, V), 1)      # vocab index per (s, v)
            onehot = (col == ids).astype(emb_ref.dtype)               # (S, V); OOB id -> zero row
            gathered = jnp.dot(onehot, emb_ref[...],
                               preferred_element_type=jnp.float32)    # (S, E_pad) on the MXU
            out_ref[...] = (gathered + pos_ref[...].astype(jnp.float32)).astype(out_ref.dtype)

        def run(single_buffer):
            return pl.pallas_call(
                kernel,
                out_shape=out_shape,
                grid=(B,),
                in_specs=[
                    pl.BlockSpec((None, S, 1), lambda b: (b, 0, 0)),
                    _block_spec((S, E_pad), lambda b: (0, 0), single_buffer),
                    _block_spec((V, E_pad), lambda b: (0, 0), single_buffer),
                ],
                out_specs=pl.BlockSpec((None, S, E_pad), lambda b: (b, 0, 0)),
                compiler_params=_cparams(resident_bytes),
            )(tokens_col, pos_emb, emb_table)

        try:
            out = run(single_buffer=True)
        except Exception:  # fall back to default double-buffering if Buffered(1) is rejected
            out = run(single_buffer=False)

    else:
        # -------- HBM row-gather: table too large for VMEM or reuse too low ---------
        tokens_flat = tokens.reshape(B * S)  # scalar-prefetched into SMEM

        def kernel(tok_ref, pos_ref, emb_hbm, out_ref, rows_ref, sems):
            b = pl.program_id(0)
            base = b * S
            # Issue all S row DMAs (kept in flight together); clamp ids for DMA safety.
            for t in range(S):
                idx = jnp.clip(tok_ref[base + t], 0, V - 1)
                pltpu.make_async_copy(emb_hbm.at[pl.ds(idx, 1), :],
                                      rows_ref.at[pl.ds(t, 1), :],
                                      sems.at[t]).start()
            for t in range(S):
                pltpu.make_async_copy(emb_hbm.at[pl.ds(0, 1), :],
                                      rows_ref.at[pl.ds(t, 1), :],
                                      sems.at[t]).wait()
            out_ref[...] = (rows_ref[...].astype(jnp.float32)
                            + pos_ref[...].astype(jnp.float32)).astype(out_ref.dtype)

        hbm_work = 5 * tile_bytes  # pos + rows scratch + double-buffered output + slack

        def run(single_buffer):
            grid_spec = pltpu.PrefetchScalarGridSpec(
                num_scalar_prefetch=1,
                grid=(B,),
                in_specs=[
                    _block_spec((S, E_pad), lambda b, tok: (0, 0), single_buffer),
                    pl.BlockSpec(memory_space=pl.ANY),  # table stays in HBM
                ],
                out_specs=pl.BlockSpec((None, S, E_pad), lambda b, tok: (b, 0, 0)),
                scratch_shapes=[pltpu.VMEM((S, E_pad), out_dtype),
                                pltpu.SemaphoreType.DMA((S,))],
            )
            return pl.pallas_call(
                kernel,
                out_shape=out_shape,
                grid_spec=grid_spec,
                compiler_params=_cparams(hbm_work),
            )(tokens_flat, pos_emb, emb_table)

        try:
            out = run(single_buffer=True)
        except Exception:
            out = run(single_buffer=False)

    if E_pad != E:
        out = out[..., :E]
    return out


if __name__ == "__main__":
    # Small shapes consistent with the module: vocab=64, n_embed=32, n_tokens=8, batch=2.
    VOCAB, N_EMBED, N_TOKENS, BATCH = 64, 32, 8, 2

    key = jax.random.PRNGKey(0)
    k_tok, k_emb, k_pos = jax.random.split(key, 3)

    tokens = jax.random.randint(k_tok, (BATCH, N_TOKENS), 0, VOCAB, dtype=jnp.int32)
    emb_table = jax.random.normal(k_emb, (VOCAB, N_EMBED), dtype=jnp.float32)
    pos_emb = 0.01 * jax.random.normal(k_pos, (N_TOKENS, N_EMBED), dtype=jnp.float32)

    # Pure-JAX reference: x = token_embedding(tokens); x += positional_embedding
    ref = emb_table[tokens] + pos_emb[None, :, :]

    # Exercise both paths: the resident MXU-gather fast path and the HBM row-gather path
    # (the one used for real CLIP vocab sizes), checking each against the reference.
    out_resident = jax.block_until_ready(
        clip_embedding(tokens, emb_table, pos_emb, path="resident"))
    out_hbm = jax.block_until_ready(
        clip_embedding(tokens, emb_table, pos_emb, path="hbm"))

    assert out_resident.shape == (BATCH, N_TOKENS, N_EMBED)
    assert out_hbm.shape == (BATCH, N_TOKENS, N_EMBED)
    assert jnp.allclose(out_resident, ref, atol=1e-6), "resident-path mismatch vs reference"
    assert jnp.allclose(out_hbm, ref, atol=1e-6), "hbm-path mismatch vs reference"

    print("KERNEL_OK")
</pallas_src>

<mosaic_0001>
module attributes {stable_mosaic.version = 11 : i64} {
  func.func @kernel(%arg0: i32, %arg1: memref<1x8x1xi32, #tpu.memory_space<vmem>>, %arg2: memref<8x128xf32, #tpu.memory_space<vmem>>, %arg3: memref<64x128xf32, #tpu.memory_space<vmem>>, %arg4: memref<1x8x128xf32, #tpu.memory_space<vmem>>) attributes {dimension_semantics = [#tpu.dimension_semantics<parallel>], iteration_bounds = array<i64: 2>, scalar_prefetch = 0 : i64, scratch_operands = 0 : i64, tpu.core_type = #tpu.core_type<tc>, window_params = [{transform_indices = @transform_0, window_bounds = array<i64: 1, 8, 1>}, {pipeline_mode = #tpu.pipeline_mode<synchronous>, transform_indices = @transform_1, window_bounds = array<i64: 8, 128>}, {pipeline_mode = #tpu.pipeline_mode<synchronous>, transform_indices = @transform_2, window_bounds = array<i64: 64, 128>}, {transform_indices = @transform_3, window_bounds = array<i64: 1, 8, 128>}]} {
    %c0 = arith.constant 0 : index
    %c0_0 = arith.constant 0 : index
    %c0_1 = arith.constant 0 : index
    %0 = vector.load %arg1[%c0, %c0_0, %c0_1] : memref<1x8x1xi32, #tpu.memory_space<vmem>>, vector<1x8x1xi32>
    %1 = vector.shape_cast %0 : vector<1x8x1xi32> to vector<8x1xi32>
    %2 = tpu.iota {dimensions = array<i32: 1>} : vector<8x64xi32>
    %3 = vector.broadcast %1 : vector<8x1xi32> to vector<8x64xi32>
    %4 = arith.cmpi eq, %2, %3 : vector<8x64xi32>
    %5 = arith.extui %4 : vector<8x64xi1> to vector<8x64xi32>
    %6 = arith.sitofp %5 : vector<8x64xi32> to vector<8x64xf32>
    %c0_2 = arith.constant 0 : index
    %c0_3 = arith.constant 0 : index
    %7 = vector.load %arg3[%c0_2, %c0_3] : memref<64x128xf32, #tpu.memory_space<vmem>>, vector<64x128xf32>
    %cst = arith.constant dense<0.000000e+00> : vector<8x128xf32>
    %8 = tpu.matmul %6, %7, %cst {dimension_numbers = #tpu.dot_dimension_numbers<[1], [0], [0], [1], [0, 0, 1, 1], [], []>} : vector<8x64xf32>, vector<64x128xf32>, vector<8x128xf32> -> vector<8x128xf32>
    %c0_4 = arith.constant 0 : index
    %c0_5 = arith.constant 0 : index
    %9 = vector.load %arg2[%c0_4, %c0_5] : memref<8x128xf32, #tpu.memory_space<vmem>>, vector<8x128xf32>
    %10 = arith.addf %8, %9 : vector<8x128xf32>
    %c0_6 = arith.constant 0 : index
    %c0_7 = arith.constant 0 : index
    %c0_8 = arith.constant 0 : index
    %11 = vector.load %arg4[%c0_6, %c0_7, %c0_8] : memref<1x8x128xf32, #tpu.memory_space<vmem>>, vector<1x8x128xf32>
    %12 = vector.shape_cast %11 : vector<1x8x128xf32> to vector<8x128xf32>
    %13 = vector.shape_cast %10 : vector<8x128xf32> to vector<1x8x128xf32>
    tpu.vector_store %arg4[%c0_6, %c0_7, %c0_8], %13 {strides = array<i32>} : memref<1x8x128xf32, #tpu.memory_space<vmem>>, vector<1x8x128xf32>,
    return
  }
  func.func @transform_0(%arg0: i32) -> (i32, i32, i32) {
    %c0_i32 = arith.constant 0 : i32
    %c0_i32_0 = arith.constant 0 : i32
    %c0_i32_1 = arith.constant 0 : i32
    return %arg0, %c0_i32, %c0_i32_0 : i32, i32, i32
  }
  func.func @transform_1(%arg0: i32) -> (i32, i32) {
    %c0_i32 = arith.constant 0 : i32
    %c0_i32_0 = arith.constant 0 : i32
    %c0_i32_1 = arith.constant 0 : i32
    return %c0_i32, %c0_i32_0 : i32, i32
  }
  func.func @transform_2(%arg0: i32) -> (i32, i32) {
    %c0_i32 = arith.constant 0 : i32
    %c0_i32_0 = arith.constant 0 : i32
    %c0_i32_1 = arith.constant 0 : i32
    return %c0_i32, %c0_i32_0 : i32, i32
  }
  func.func @transform_3(%arg0: i32) -> (i32, i32, i32) {
    %c0_i32 = arith.constant 0 : i32
    %c0_i32_0 = arith.constant 0 : i32
    %c0_i32_1 = arith.constant 0 : i32
    return %arg0, %c0_i32, %c0_i32_0 : i32, i32, i32
  }
}

module attributes {stable_mosaic.version = 11 : i64} {
  func.func @kernel(%arg0: i32, %arg1: memref<1x8x1xi32, #tpu.memory_space<vmem>>, %arg2: memref<8x128xf32, #tpu.memory_space<vmem>>, %arg3: memref<64x128xf32, #tpu.memory_space<vmem>>, %arg4: memref<1x8x128xf32, #tpu.memory_space<vmem>>) attributes {dimension_semantics = [#tpu.dimension_semantics<parallel>], iteration_bounds = array<i64: 2>, scalar_prefetch = 0 : i64, scratch_operands = 0 : i64, tpu.core_type = #tpu.core_type<tc>, window_params = [{transform_indices = @transform_0, window_bounds = array<i64: 1, 8, 1>}, {pipeline_mode = #tpu.pipeline_mode<synchronous>, transform_indices = @transform_1, window_bounds = array<i64: 8, 128>}, {pipeline_mode = #tpu.pipeline_mode<synchronous>, transform_indices = @transform_2, window_bounds = array<i64: 64, 128>}, {transform_indices = @transform_3, window_bounds = array<i64: 1, 8, 128>}]} {
    %c0 = arith.constant 0 : index
    %c0_0 = arith.constant 0 : index
    %c0_1 = arith.constant 0 : index
    %0 = vector.load %arg1[%c0, %c0_0, %c0_1] : memref<1x8x1xi32, #tpu.memory_space<vmem>>, vector<1x8x1xi32>
    %1 = vector.shape_cast %0 : vector<1x8x1xi32> to vector<8x1xi32>
    %2 = tpu.iota {dimensions = array<i32: 1>} : vector<8x64xi32>
    %3 = vector.broadcast %1 : vector<8x1xi32> to vector<8x64xi32>
    %4 = arith.cmpi eq, %2, %3 : vector<8x64xi32>
    %5 = arith.extui %4 : vector<8x64xi1> to vector<8x64xi32>
    %6 = arith.sitofp %5 : vector<8x64xi32> to vector<8x64xf32>
    %c0_2 = arith.constant 0 : index
    %c0_3 = arith.constant 0 : index
    %7 = vector.load %arg3[%c0_2, %c0_3] : memref<64x128xf32, #tpu.memory_space<vmem>>, vector<64x128xf32>
    %cst = arith.constant dense<0.000000e+00> : vector<8x128xf32>
    %8 = tpu.matmul %6, %7, %cst {dimension_numbers = #tpu.dot_dimension_numbers<[1], [0], [0], [1], [0, 0, 1, 1], [], []>} : vector<8x64xf32>, vector<64x128xf32>, vector<8x128xf32> -> vector<8x128xf32>
    %c0_4 = arith.constant 0 : index
    %c0_5 = arith.constant 0 : index
    %9 = vector.load %arg2[%c0_4, %c0_5] : memref<8x128xf32, #tpu.memory_space<vmem>>, vector<8x128xf32>
    %10 = arith.addf %8, %9 : vector<8x128xf32>
    %c0_6 = arith.constant 0 : index
    %c0_7 = arith.constant 0 : index
    %c0_8 = arith.constant 0 : index
    %11 = vector.load %arg4[%c0_6, %c0_7, %c0_8] : memref<1x8x128xf32, #tpu.memory_space<vmem>>, vector<1x8x128xf32>
    %12 = vector.shape_cast %11 : vector<1x8x128xf32> to vector<8x128xf32>
    %13 = vector.shape_cast %10 : vector<8x128xf32> to vector<1x8x128xf32>
    tpu.vector_store %arg4[%c0_6, %c0_7, %c0_8], %13 {strides = array<i32>} : memref<1x8x128xf32, #tpu.memory_space<vmem>>, vector<1x8x128xf32>,
    return
  }
  func.func @transform_0(%arg0: i32) -> (i32, i32, i32) {
    %c0_i32 = arith.constant 0 : i32
    %c0_i32_0 = arith.constant 0 : i32
    %c0_i32_1 = arith.constant 0 : i32
    return %arg0, %c0_i32, %c0_i32_0 : i32, i32, i32
  }
  func.func @transform_1(%arg0: i32) -> (i32, i32) {
    %c0_i32 = arith.constant 0 : i32
    %c0_i32_0 = arith.constant 0 : i32
    %c0_i32_1 = arith.constant 0 : i32
    return %c0_i32, %c0_i32_0 : i32, i32
  }
  func.func @transform_2(%arg0: i32) -> (i32, i32) {
    %c0_i32 = arith.constant 0 : i32
    %c0_i32_0 = arith.constant 0 : i32
    %c0_i32_1 = arith.constant 0 : i32
    return %c0_i32, %c0_i32_0 : i32, i32
  }
  func.func @transform_3(%arg0: i32) -> (i32, i32, i32) {
    %c0_i32 = arith.constant 0 : i32
    %c0_i32_0 = arith.constant 0 : i32
    %c0_i32_1 = arith.constant 0 : i32
    return %arg0, %c0_i32, %c0_i32_0 : i32, i32, i32
  }
}

</mosaic_0001>

<llo_original>
// kernel: tpu_custom_call.1
$region0: #{tpu_custom_call.1}
  #allocation0 [shape = 'u32[]', space=smem, size = 0x4, offset = 0x4, fixed_abs, tag = 'smem constant byte address 0x4 - core index']
  #allocation1 [shape = 'u32[72,128]{1,0:T(1,128)}', space=vmem, size = 0x9000, scoped, tag = 'internal scratch']
  %s0 = inlined_call_operand.vmem [shape: s32[2,8,1], index: 0, kind: input, shape index: {}]
  %s1 = inlined_call_operand.vmem [shape: f32[8,128], index: 1, kind: input, shape index: {}]
  %s2 = inlined_call_operand.hbm [shape: f32[64,128], index: 2, kind: input, shape index: {}]
  %s3 = inlined_call_operand.hbm [shape: f32[2,8,128], index: 3, kind: output, shape index: {}]
  %s4 = sld [smem:[#allocation0]]
  $region49: #{tpu_custom_call.1} parent=0
    _
  %s6 = ssub.s32 1, %s4
  %s7 = scalar_select 0, %s6, %s4
  $region1: #{tpu_custom_call.1} parent=0
    #allocation2 [shape = 'u8[32768]{0}', space=vmem, size = 0x8000, scoped, tag = 'input window, operand 2, single buffered']
    #allocation3 [shape = 's32[2]{0}', space=sflag, size = 0x8, scoped, tag = 'scoped memory for tpu_custom_call.1']
    #allocation4 [shape = 's32[2]{0}', space=sflag, size = 0x8, scoped, tag = 'scoped memory for tpu_custom_call.1']
    #allocation5 [shape = 'u8[8192]{0}', space=vmem, size = 0x2000, scoped, tag = 'output window, operand 0']
    %8 = vsyncpa [#allocation3], 0
    %9 = vsyncpa [#allocation4], 0
    %s10 = scalar_lea.sflag [#allocation4], 1
    %11 = vsyncpa %s10, 0
    loop: start=0, step=1, limit=4
    $region2: #{tpu_custom_call.1} parent=1 // loop_pre_header
      _
    $region3: #{tpu_custom_call.1} parent=1 // loop_header
      %s13 = sphi 0, %s17
      %p14 = scmp.ge.s32.totalorder %s13, 4
      %s23 = sphi 0, %s25
      %s26 = sphi 0, %s23
      %s27 = sphi 0, %s26
      %s43 = sphi 0, %s27
      %s47 = sphi 0, %s47
      %s49 = sphi 0, %s47
      %s50 = sphi 0, %s49
      %s64 = sphi 0, %s50
      %s68 = sphi 0, %s68
      %s70 = sphi 0, %s68
      %s71 = sphi 0, %s70
      %s85 = sphi 0, %s71
      %s91 = sphi 0, %s93
      %s94 = sphi 0, %s91
      %s95 = sphi 0, %s94
      %s111 = sphi 0, %s95
    $region4: #{tpu_custom_call.1} parent=1 // loop_header_branch
      %16 = sbr.rel (%p14) target = $region8
    $region5: #{tpu_custom_call.1} parent=1 // loop_body
      %s18 = ssub.s32 %s13, 1
      %s19 = ssub.s32 %s13, 2
      %s20 = sadd.s32 %s13, 1
      %s21 = ssub.s32 %s13, %s20
      %p22 = scmp.eq.s32.totalorder %s21, 0
      %s24 = sadd.s32 %s23, 1
      %s25 = scalar_select %p22, %s23, %s24
      %p28 = pneg %p22
      %p29 = scmp.eq.s32.totalorder %s13, 1
      %p30 = por %p28, %p29
      %p31 = scmp.ne.s32.totalorder %s23, %s26
      %p32 = scmp.eq.s32.totalorder %s13, 0
      %p33 = por %p31, %p32
      %p34 = scmp.ne.s32.totalorder %s23, %s26
      %p35 = scmp.eq.s32.totalorder %s18, 1
      %p36 = por %p34, %p35
      %p37 = scmp.ne.s32.totalorder %s26, %s27
      %p38 = scmp.eq.s32.totalorder %s18, 0
      %p39 = por %p37, %p38
      %p40 = scmp.ne.s32.totalorder %s26, %s27
      %p41 = scmp.eq.s32.totalorder %s19, 1
      %p42 = por %p40, %p41
      %p44 = scmp.ne.s32.totalorder %s27, %s43
      %p45 = scmp.eq.s32.totalorder %s19, 0
      %p46 = por %p44, %p45
      %s48 = sadd.s32 %s47, 1
      %p51 = scmp.eq.s32.totalorder %s13, 1
      %p52 = scmp.ne.s32.totalorder %s47, %s49
      %p53 = scmp.eq.s32.totalorder %s13, 0
      %p54 = por %p52, %p53
      %p55 = scmp.ne.s32.totalorder %s47, %s49
      %p56 = scmp.eq.s32.totalorder %s18, 1
      %p57 = por %p55, %p56
      %p58 = scmp.ne.s32.totalorder %s49, %s50
      %p59 = scmp.eq.s32.totalorder %s18, 0
      %p60 = por %p58, %p59
      %p61 = scmp.ne.s32.totalorder %s49, %s50
      %p62 = scmp.eq.s32.totalorder %s19, 1
      %p63 = por %p61, %p62
      %p65 = scmp.ne.s32.totalorder %s50, %s64
      %p66 = scmp.eq.s32.totalorder %s19, 0
      %p67 = por %p65, %p66
      %s69 = sadd.s32 %s68, 1
      %p72 = scmp.eq.s32.totalorder %s13, 1
      %p73 = scmp.ne.s32.totalorder %s68, %s70
      %p74 = scmp.eq.s32.totalorder %s13, 0
      %p75 = por %p73, %p74
      %p76 = scmp.ne.s32.totalorder %s68, %s70
      %p77 = scmp.eq.s32.totalorder %s18, 1
      %p78 = por %p76, %p77
      %p79 = scmp.ne.s32.totalorder %s70, %s71
      %p80 = scmp.eq.s32.totalorder %s18, 0
      %p81 = por %p79, %p80
      %p82 = scmp.ne.s32.totalorder %s70, %s71
      %p83 = scmp.eq.s32.totalorder %s19, 1
      %p84 = por %p82, %p83
      %p86 = scmp.ne.s32.totalorder %s71, %s85
      %p87 = scmp.eq.s32.totalorder %s19, 0
      %p88 = por %p86, %p87
      %s89 = ssub.s32 %s13, %s20
      %p90 = scmp.eq.s32.totalorder %s89, 0
      %s92 = sadd.s32 %s91, 1
      %s93 = scalar_select %p90, %s91, %s92
      %p96 = pneg %p90
      %p97 = scmp.eq.s32.totalorder %s13, 1
      %p98 = por %p96, %p97
      %p99 = scmp.ne.s32.totalorder %s91, %s94
      %p100 = scmp.eq.s32.totalorder %s13, 0
      %p101 = por %p99, %p100
      %p102 = scmp.ne.s32.totalorder %s91, %s94
      %p103 = scmp.eq.s32.totalorder %s18, 1
      %p104 = por %p102, %p103
      %p105 = scmp.ne.s32.totalorder %s94, %s95
      %p106 = scmp.eq.s32.totalorder %s18, 0
      %p107 = por %p105, %p106
      %p108 = scmp.ne.s32.totalorder %s94, %s95
      %p109 = scmp.eq.s32.totalorder %s19, 1
      %p110 = por %p108, %p109
      %p112 = scmp.ne.s32.totalorder %s95, %s111
      %p113 = scmp.eq.s32.totalorder %s19, 0
      %p114 = por %p112, %p113
      %p115 = scmp.le.s32.totalorder 1, %s13
      %p116 = scmp.lt.s32.totalorder %s13, 3
      %p117 = pnand %p115, %p116
      %p118 = pneg %p117
      // Predicated region
      $region9: #{tpu_custom_call.1} parent=5 // pred_check
        _
      $region10: #{tpu_custom_call.1} parent=5 // pred_check_branch
        %120 = sbr.rel (%p117) target = $region12
      $region11: #{tpu_custom_call.1} parent=5 // pred_region
        %s121 = ssub.s32 %s13, 1
        // Predicated region
        $region13: #{tpu_custom_call.1} parent=11 // pred_check
          %p122 = pneg %p60
        $region14: #{tpu_custom_call.1} parent=11 // pred_check_branch
          %124 = sbr.rel (%p122) target = $region16
        $region15: #{tpu_custom_call.1} parent=11 // pred_region
          _
        $region16: #{tpu_custom_call.1} parent=11 // pred_fallthru
          _
        // Predicated region
        $region17: #{tpu_custom_call.1} parent=11 // pred_check
          %p125 = pneg %p81
        $region18: #{tpu_custom_call.1} parent=11 // pred_check_branch
          %127 = sbr.rel (%p125) target = $region20
        $region19: #{tpu_custom_call.1} parent=11 // pred_region
          %129 = vsyncadd [#allocation3], 0
          %s130 = sshll.u32 %s2, 4
          %s131 = int_to_ptr.hbm [resolvable:$true] %s130
          %s132 = sshll.u32 [#allocation2], 4
          %s133 = int_to_ptr.vmem [resolvable:$true] %s132
          %138 = dma.hbm_to_vmem [thread:$0]  %s131, 1024, %s133, [#allocation3], 128, 128, 8
        $region20: #{tpu_custom_call.1} parent=11 // pred_fallthru
          _
      $region12: #{tpu_custom_call.1} parent=5 // pred_fallthru
        _
      %p139 = scmp.lt.s32.totalorder %s13, 2
      // Predicated region
      $region21: #{tpu_custom_call.1} parent=5 // pred_check
        %p140 = pneg %p139
      $region22: #{tpu_custom_call.1} parent=5 // pred_check_branch
        %142 = sbr.rel (%p140) target = $region24
      $region23: #{tpu_custom_call.1} parent=5 // pred_region
        // Predicated region
        $region25: #{tpu_custom_call.1} parent=23 // pred_check
          %p143 = pneg %p33
        $region26: #{tpu_custom_call.1} parent=23 // pred_check_branch
          %145 = sbr.rel (%p143) target = $region28
        $region27: #{tpu_custom_call.1} parent=23 // pred_region
          %p146 = scmp.lt.s32.totalorder %s13, 1
          %s147 = scalar_select %p146, %s13, 1
          %s148 = smul.addr %s147, 8
          %s149 = scalar_lea.vmem %s0, %s148
        $region28: #{tpu_custom_call.1} parent=23 // pred_fallthru
          _
      $region24: #{tpu_custom_call.1} parent=5 // pred_fallthru
        _
      %p150 = scmp.le.s32.totalorder 1, %s13
      %p151 = scmp.lt.s32.totalorder %s13, 3
      %p152 = pnand %p150, %p151
      %p153 = pneg %p152
      // Predicated region
      $region29: #{tpu_custom_call.1} parent=5 // pred_check
        _
      $region30: #{tpu_custom_call.1} parent=5 // pred_check_branch
        %155 = sbr.rel (%p152) target = $region32
      $region31: #{tpu_custom_call.1} parent=5 // pred_region
        %s156 = ssub.s32 %s13, 1
        // Predicated region
        $region33: #{tpu_custom_call.1} parent=31 // pred_check
          %p157 = pneg %p81
        $region34: #{tpu_custom_call.1} parent=31 // pred_check_branch
          %159 = sbr.rel (%p157) target = $region36
        $region35: #{tpu_custom_call.1} parent=31 // pred_region
          %161 = dma.done [#allocation3], 1024
        $region36: #{tpu_custom_call.1} parent=31 // pred_fallthru
          _
        %p162 = scmp.lt.s32.totalorder %s18, 1
        %s163 = scalar_select %p162, %s18, 1
        %s164 = smul.addr %s163, 8
        %s165 = scalar_lea.vmem %s0, %s164
        %p166 = pneg %p39
        %p167 = pneg %p36
        %p168 = pneg %p60
        %p169 = pneg %p57
        %p170 = pneg %p81
        %p171 = pneg %p78
        %p172 = pneg %p107
        %p173 = pneg %p104
        %s174 = sand.u32 %s94, 1
        %s175 = scalar_lea.sflag [#allocation4], %s174
        %s176 = sand.u32 %s94, 1
        %s177 = smul.addr %s176, 8
        %s178 = scalar_lea.vmem [#allocation5], %s177
        %p179 = scmp.lt.s32.totalorder %s18, 1
        %s180 = scalar_select %p179, %s18, 1
        %s181 = smul.addr %s180, 8
        %s182 = scalar_lea.vmem %s0, %s181
        %v183 = vld [vmem:[%s182] sm:$0xff]
        %v184 = vlaneseq
        %v185 = vand.u32 %v184, 127
        %186 = vset.pattern.permute.xlu0 0
        %187 = vperm.xlu0 %186, %v183
        %v188 = vpop.permute.xlu0 %187
        %vm189 = vcmp.eq.s32.totalorder %v185, %v188
        %v190 = vsel %vm189, 1, 0
        %v191 = vcvt.s32.f32 %v190
        %v192 = vld [vmem:[#allocation2] sm:$0xff]
        %v193 = vld [vmem:[#allocation2 + $0x8] sm:$0xff]
        %v194 = vld [vmem:[#allocation2 + $0x10] sm:$0xff]
        %v195 = vld [vmem:[#allocation2 + $0x18] sm:$0xff]
        %v196 = vld [vmem:[#allocation2 + $0x20] sm:$0xff]
        %v197 = vld [vmem:[#allocation2 + $0x28] sm:$0xff]
        %v198 = vld [vmem:[#allocation2 + $0x30] sm:$0xff]
        %v199 = vld [vmem:[#allocation2 + $0x38] sm:$0xff]
        %v200 = vld [vmem:[%s1] sm:$0xff]
        %vm201 = vcmask 523264
        %v203 = vsel %vm201, %v191, 0
        %205 = vmatpush.msra.mxu0 0.0
        %206 = vmatpush.msra.mxu0 0.0
        %207 = vmatpush.msra.mxu0 0.0
        %208 = vmatpush.msra.mxu0 0.0
        %209 = vmatpush.msra.mxu0 0.0
        %210 = vmatpush.msra.mxu0 0.0
        %211 = vmatpush.msra.mxu0 0.0
        %212 = vmatpush.msra.mxu0 0.0
        %213 = vmatpush.msra.mxu0 %v199
        %214 = vmatpush.msra.mxu0 %v198
        %215 = vmatpush.msra.mxu0 %v197
        %216 = vmatpush.msra.mxu0 %v196
        %217 = vmatpush.msra.mxu0 %v195
        %218 = vmatpush.msra.mxu0 %v194
        %219 = vmatpush.msra.mxu0 %v193
        %220 = vmatpush.msra.mxu0 %v192
        %221 = vmatmul.f32.gmra.mxu0 %v203
        %v222 = vpop.f32.mrf.mxu0
        %v223 = vadd.f32 %v200, %v222
        %224 = vdwg.mxu0
        %225 = vst [vmem:[%s178] sm:$0xff] %v223
        %s226 = sand.u32 %s94, 1
        %s227 = scalar_lea.sflag [#allocation4], %s226
        %s228 = sand.u32 %s94, 1
        %s229 = smul.addr %s228, 8
        %s230 = scalar_lea.vmem [#allocation5], %s229
        // Predicated region
        $region37: #{tpu_custom_call.1} parent=31 // pred_check
          %p231 = pneg %p104
        $region38: #{tpu_custom_call.1} parent=31 // pred_check_branch
          %233 = sbr.rel (%p231) target = $region40
        $region39: #{tpu_custom_call.1} parent=31 // pred_region
          %235 = vsyncadd %s227, 0
          %s236 = smul.addr %s18, 8
          %s237 = scalar_lea.hbm %s3, %s236
          %s239 = sshll.u32 %s230, 4
          %s240 = int_to_ptr.vmem [resolvable:$true] %s239
          %s241 = sshll.u32 %s237, 4
          %s242 = int_to_ptr.hbm [resolvable:$true] %s241
          %244 = dma.vmem_to_hbm [thread:$0]  %s240, 128, %s242, %s227
        $region40: #{tpu_custom_call.1} parent=31 // pred_fallthru
          _
      $region32: #{tpu_custom_call.1} parent=5 // pred_fallthru
        _
      %p245 = scmp.le.s32.totalorder 2, %s13
      // Predicated region
      $region41: #{tpu_custom_call.1} parent=5 // pred_check
        %p246 = pneg %p245
      $region42: #{tpu_custom_call.1} parent=5 // pred_check_branch
        %248 = sbr.rel (%p246) target = $region44
      $region43: #{tpu_custom_call.1} parent=5 // pred_region
        %s249 = ssub.s32 %s13, 2
        // Predicated region
        $region45: #{tpu_custom_call.1} parent=43 // pred_check
          %p250 = pneg %p110
        $region46: #{tpu_custom_call.1} parent=43 // pred_check_branch
          %252 = sbr.rel (%p250) target = $region48
        $region47: #{tpu_custom_call.1} parent=43 // pred_region
          %s253 = sand.u32 %s95, 1
          %s254 = scalar_lea.sflag [#allocation4], %s253
          %s255 = sand.u32 %s95, 1
          %s256 = smul.addr %s255, 8
          %s257 = scalar_lea.vmem [#allocation5], %s256
          %259 = dma.done %s254, 128
        $region48: #{tpu_custom_call.1} parent=43 // pred_fallthru
          _
      $region44: #{tpu_custom_call.1} parent=5 // pred_fallthru
        _
    $region6: #{tpu_custom_call.1} parent=1 // loop_footer
      %s17 = sadd.s32 1, %s13
    $region7: #{tpu_custom_call.1} parent=1 // loop_footer_branch
      %12 = sbr.rel target = $region3
    $region8: #{tpu_custom_call.1} parent=1 // loop_exit
      _
    %260 = vsyncpa [#allocation3], 1
    %s261 = scalar_lea.sflag [#allocation3], 1
    %262 = vsyncpa %s261, 1
    %263 = vsyncpa [#allocation4], 1
    %s264 = scalar_lea.sflag [#allocation4], 1
    %265 = vsyncpa %s264, 1

// kernel: tpu_custom_call.1
$region0: #{tpu_custom_call.1}
  #allocation0 [shape = 'u32[]', space=smem, size = 0x4, offset = 0x4, fixed_abs, tag = 'smem constant byte address 0x4 - core index']
  #allocation1 [shape = 'u32[72,128]{1,0:T(1,128)}', space=vmem, size = 0x9000, scoped, tag = 'internal scratch']
  %s0 = inlined_call_operand.vmem [shape: s32[2,8,1], index: 0, kind: input, shape index: {}]
  %s1 = inlined_call_operand.vmem [shape: f32[8,128], index: 1, kind: input, shape index: {}]
  %s2 = inlined_call_operand.hbm [shape: f32[64,128], index: 2, kind: input, shape index: {}]
  %s3 = inlined_call_operand.hbm [shape: f32[2,8,128], index: 3, kind: output, shape index: {}]
  %s4 = sld [smem:[#allocation0]]
  $region49: #{tpu_custom_call.1} parent=0
    _
  %s6 = ssub.s32 1, %s4
  %s7 = scalar_select 0, %s6, %s4
  $region1: #{tpu_custom_call.1} parent=0
    #allocation2 [shape = 'u8[32768]{0}', space=vmem, size = 0x8000, scoped, tag = 'input window, operand 2, single buffered']
    #allocation3 [shape = 's32[2]{0}', space=sflag, size = 0x8, scoped, tag = 'scoped memory for tpu_custom_call.1']
    #allocation4 [shape = 's32[2]{0}', space=sflag, size = 0x8, scoped, tag = 'scoped memory for tpu_custom_call.1']
    #allocation5 [shape = 'u8[8192]{0}', space=vmem, size = 0x2000, scoped, tag = 'output window, operand 0']
    %8 = vsyncpa [#allocation3], 0
    %9 = vsyncpa [#allocation4], 0
    %s10 = scalar_lea.sflag [#allocation4], 1
    %11 = vsyncpa %s10, 0
    loop: start=0, step=1, limit=4
    $region2: #{tpu_custom_call.1} parent=1 // loop_pre_header
      _
    $region3: #{tpu_custom_call.1} parent=1 // loop_header
      %s13 = sphi 0, %s17
      %p14 = scmp.ge.s32.totalorder %s13, 4
      %s23 = sphi 0, %s25
      %s26 = sphi 0, %s23
      %s27 = sphi 0, %s26
      %s43 = sphi 0, %s27
      %s47 = sphi 0, %s47
      %s49 = sphi 0, %s47
      %s50 = sphi 0, %s49
      %s64 = sphi 0, %s50
      %s68 = sphi 0, %s68
      %s70 = sphi 0, %s68
      %s71 = sphi 0, %s70
      %s85 = sphi 0, %s71
      %s91 = sphi 0, %s93
      %s94 = sphi 0, %s91
      %s95 = sphi 0, %s94
      %s111 = sphi 0, %s95
    $region4: #{tpu_custom_call.1} parent=1 // loop_header_branch
      %16 = sbr.rel (%p14) target = $region8
    $region5: #{tpu_custom_call.1} parent=1 // loop_body
      %s18 = ssub.s32 %s13, 1
      %s19 = ssub.s32 %s13, 2
      %s20 = sadd.s32 %s13, 1
      %s21 = ssub.s32 %s13, %s20
      %p22 = scmp.eq.s32.totalorder %s21, 0
      %s24 = sadd.s32 %s23, 1
      %s25 = scalar_select %p22, %s23, %s24
      %p28 = pneg %p22
      %p29 = scmp.eq.s32.totalorder %s13, 1
      %p30 = por %p28, %p29
      %p31 = scmp.ne.s32.totalorder %s23, %s26
      %p32 = scmp.eq.s32.totalorder %s13, 0
      %p33 = por %p31, %p32
      %p34 = scmp.ne.s32.totalorder %s23, %s26
      %p35 = scmp.eq.s32.totalorder %s18, 1
      %p36 = por %p34, %p35
      %p37 = scmp.ne.s32.totalorder %s26, %s27
      %p38 = scmp.eq.s32.totalorder %s18, 0
      %p39 = por %p37, %p38
      %p40 = scmp.ne.s32.totalorder %s26, %s27
      %p41 = scmp.eq.s32.totalorder %s19, 1
      %p42 = por %p40, %p41
      %p44 = scmp.ne.s32.totalorder %s27, %s43
      %p45 = scmp.eq.s32.totalorder %s19, 0
      %p46 = por %p44, %p45
      %s48 = sadd.s32 %s47, 1
      %p51 = scmp.eq.s32.totalorder %s13, 1
      %p52 = scmp.ne.s32.totalorder %s47, %s49
      %p53 = scmp.eq.s32.totalorder %s13, 0
      %p54 = por %p52, %p53
      %p55 = scmp.ne.s32.totalorder %s47, %s49
      %p56 = scmp.eq.s32.totalorder %s18, 1
      %p57 = por %p55, %p56
      %p58 = scmp.ne.s32.totalorder %s49, %s50
      %p59 = scmp.eq.s32.totalorder %s18, 0
      %p60 = por %p58, %p59
      %p61 = scmp.ne.s32.totalorder %s49, %s50
      %p62 = scmp.eq.s32.totalorder %s19, 1
      %p63 = por %p61, %p62
      %p65 = scmp.ne.s32.totalorder %s50, %s64
      %p66 = scmp.eq.s32.totalorder %s19, 0
      %p67 = por %p65, %p66
      %s69 = sadd.s32 %s68, 1
      %p72 = scmp.eq.s32.totalorder %s13, 1
      %p73 = scmp.ne.s32.totalorder %s68, %s70
      %p74 = scmp.eq.s32.totalorder %s13, 0
      %p75 = por %p73, %p74
      %p76 = scmp.ne.s32.totalorder %s68, %s70
      %p77 = scmp.eq.s32.totalorder %s18, 1
      %p78 = por %p76, %p77
      %p79 = scmp.ne.s32.totalorder %s70, %s71
      %p80 = scmp.eq.s32.totalorder %s18, 0
      %p81 = por %p79, %p80
      %p82 = scmp.ne.s32.totalorder %s70, %s71
      %p83 = scmp.eq.s32.totalorder %s19, 1
      %p84 = por %p82, %p83
      %p86 = scmp.ne.s32.totalorder %s71, %s85
      %p87 = scmp.eq.s32.totalorder %s19, 0
      %p88 = por %p86, %p87
      %s89 = ssub.s32 %s13, %s20
      %p90 = scmp.eq.s32.totalorder %s89, 0
      %s92 = sadd.s32 %s91, 1
      %s93 = scalar_select %p90, %s91, %s92
      %p96 = pneg %p90
      %p97 = scmp.eq.s32.totalorder %s13, 1
      %p98 = por %p96, %p97
      %p99 = scmp.ne.s32.totalorder %s91, %s94
      %p100 = scmp.eq.s32.totalorder %s13, 0
      %p101 = por %p99, %p100
      %p102 = scmp.ne.s32.totalorder %s91, %s94
      %p103 = scmp.eq.s32.totalorder %s18, 1
      %p104 = por %p102, %p103
      %p105 = scmp.ne.s32.totalorder %s94, %s95
      %p106 = scmp.eq.s32.totalorder %s18, 0
      %p107 = por %p105, %p106
      %p108 = scmp.ne.s32.totalorder %s94, %s95
      %p109 = scmp.eq.s32.totalorder %s19, 1
      %p110 = por %p108, %p109
      %p112 = scmp.ne.s32.totalorder %s95, %s111
      %p113 = scmp.eq.s32.totalorder %s19, 0
      %p114 = por %p112, %p113
      %p115 = scmp.le.s32.totalorder 1, %s13
      %p116 = scmp.lt.s32.totalorder %s13, 3
      %p117 = pnand %p115, %p116
      %p118 = pneg %p117
      // Predicated region
      $region9: #{tpu_custom_call.1} parent=5 // pred_check
        _
      $region10: #{tpu_custom_call.1} parent=5 // pred_check_branch
        %120 = sbr.rel (%p117) target = $region12
      $region11: #{tpu_custom_call.1} parent=5 // pred_region
        %s121 = ssub.s32 %s13, 1
        // Predicated region
        $region13: #{tpu_custom_call.1} parent=11 // pred_check
          %p122 = pneg %p60
        $region14: #{tpu_custom_call.1} parent=11 // pred_check_branch
          %124 = sbr.rel (%p122) target = $region16
        $region15: #{tpu_custom_call.1} parent=11 // pred_region
          _
        $region16: #{tpu_custom_call.1} parent=11 // pred_fallthru
          _
        // Predicated region
        $region17: #{tpu_custom_call.1} parent=11 // pred_check
          %p125 = pneg %p81
        $region18: #{tpu_custom_call.1} parent=11 // pred_check_branch
          %127 = sbr.rel (%p125) target = $region20
        $region19: #{tpu_custom_call.1} parent=11 // pred_region
          %129 = vsyncadd [#allocation3], 0
          %s130 = sshll.u32 %s2, 4
          %s131 = int_to_ptr.hbm [resolvable:$true] %s130
          %s132 = sshll.u32 [#allocation2], 4
          %s133 = int_to_ptr.vmem [resolvable:$true] %s132
          %138 = dma.hbm_to_vmem [thread:$0]  %s131, 1024, %s133, [#allocation3], 128, 128, 8
        $region20: #{tpu_custom_call.1} parent=11 // pred_fallthru
          _
      $region12: #{tpu_custom_call.1} parent=5 // pred_fallthru
        _
      %p139 = scmp.lt.s32.totalorder %s13, 2
      // Predicated region
      $region21: #{tpu_custom_call.1} parent=5 // pred_check
        %p140 = pneg %p139
      $region22: #{tpu_custom_call.1} parent=5 // pred_check_branch
        %142 = sbr.rel (%p140) target = $region24
      $region23: #{tpu_custom_call.1} parent=5 // pred_region
        // Predicated region
        $region25: #{tpu_custom_call.1} parent=23 // pred_check
          %p143 = pneg %p33
        $region26: #{tpu_custom_call.1} parent=23 // pred_check_branch
          %145 = sbr.rel (%p143) target = $region28
        $region27: #{tpu_custom_call.1} parent=23 // pred_region
          %p146 = scmp.lt.s32.totalorder %s13, 1
          %s147 = scalar_select %p146, %s13, 1
          %s148 = smul.addr %s147, 8
          %s149 = scalar_lea.vmem %s0, %s148
        $region28: #{tpu_custom_call.1} parent=23 // pred_fallthru
          _
      $region24: #{tpu_custom_call.1} parent=5 // pred_fallthru
        _
      %p150 = scmp.le.s32.totalorder 1, %s13
      %p151 = scmp.lt.s32.totalorder %s13, 3
      %p152 = pnand %p150, %p151
      %p153 = pneg %p152
      // Predicated region
      $region29: #{tpu_custom_call.1} parent=5 // pred_check
        _
      $region30: #{tpu_custom_call.1} parent=5 // pred_check_branch
        %155 = sbr.rel (%p152) target = $region32
      $region31: #{tpu_custom_call.1} parent=5 // pred_region
        %s156 = ssub.s32 %s13, 1
        // Predicated region
        $region33: #{tpu_custom_call.1} parent=31 // pred_check
          %p157 = pneg %p81
        $region34: #{tpu_custom_call.1} parent=31 // pred_check_branch
          %159 = sbr.rel (%p157) target = $region36
        $region35: #{tpu_custom_call.1} parent=31 // pred_region
          %161 = dma.done [#allocation3], 1024
        $region36: #{tpu_custom_call.1} parent=31 // pred_fallthru
          _
        %p162 = scmp.lt.s32.totalorder %s18, 1
        %s163 = scalar_select %p162, %s18, 1
        %s164 = smul.addr %s163, 8
        %s165 = scalar_lea.vmem %s0, %s164
        %p166 = pneg %p39
        %p167 = pneg %p36
        %p168 = pneg %p60
        %p169 = pneg %p57
        %p170 = pneg %p81
        %p171 = pneg %p78
        %p172 = pneg %p107
        %p173 = pneg %p104
        %s174 = sand.u32 %s94, 1
        %s175 = scalar_lea.sflag [#allocation4], %s174
        %s176 = sand.u32 %s94, 1
        %s177 = smul.addr %s176, 8
        %s178 = scalar_lea.vmem [#allocation5], %s177
        %p179 = scmp.lt.s32.totalorder %s18, 1
        %s180 = scalar_select %p179, %s18, 1
        %s181 = smul.addr %s180, 8
        %s182 = scalar_lea.vmem %s0, %s181
        %v183 = vld [vmem:[%s182] sm:$0xff]
        %v184 = vlaneseq
        %v185 = vand.u32 %v184, 127
        %186 = vset.pattern.permute.xlu0 0
        %187 = vperm.xlu0 %186, %v183
        %v188 = vpop.permute.xlu0 %187
        %vm189 = vcmp.eq.s32.totalorder %v185, %v188
        %v190 = vsel %vm189, 1, 0
        %v191 = vcvt.s32.f32 %v190
        %v192 = vld [vmem:[#allocation2] sm:$0xff]
        %v193 = vld [vmem:[#allocation2 + $0x8] sm:$0xff]
        %v194 = vld [vmem:[#allocation2 + $0x10] sm:$0xff]
        %v195 = vld [vmem:[#allocation2 + $0x18] sm:$0xff]
        %v196 = vld [vmem:[#allocation2 + $0x20] sm:$0xff]
        %v197 = vld [vmem:[#allocation2 + $0x28] sm:$0xff]
        %v198 = vld [vmem:[#allocation2 + $0x30] sm:$0xff]
        %v199 = vld [vmem:[#allocation2 + $0x38] sm:$0xff]
        %v200 = vld [vmem:[%s1] sm:$0xff]
        %vm201 = vcmask 523264
        %v203 = vsel %vm201, %v191, 0
        %205 = vmatpush.msra.mxu0 0.0
        %206 = vmatpush.msra.mxu0 0.0
        %207 = vmatpush.msra.mxu0 0.0
        %208 = vmatpush.msra.mxu0 0.0
        %209 = vmatpush.msra.mxu0 0.0
        %210 = vmatpush.msra.mxu0 0.0
        %211 = vmatpush.msra.mxu0 0.0
        %212 = vmatpush.msra.mxu0 0.0
        %213 = vmatpush.msra.mxu0 %v199
        %214 = vmatpush.msra.mxu0 %v198
        %215 = vmatpush.msra.mxu0 %v197
        %216 = vmatpush.msra.mxu0 %v196
        %217 = vmatpush.msra.mxu0 %v195
        %218 = vmatpush.msra.mxu0 %v194
        %219 = vmatpush.msra.mxu0 %v193
        %220 = vmatpush.msra.mxu0 %v192
        %221 = vmatmul.f32.gmra.mxu0 %v203
        %v222 = vpop.f32.mrf.mxu0
        %v223 = vadd.f32 %v200, %v222
        %224 = vdwg.mxu0
        %225 = vst [vmem:[%s178] sm:$0xff] %v223
        %s226 = sand.u32 %s94, 1
        %s227 = scalar_lea.sflag [#allocation4], %s226
        %s228 = sand.u32 %s94, 1
        %s229 = smul.addr %s228, 8
        %s230 = scalar_lea.vmem [#allocation5], %s229
        // Predicated region
        $region37: #{tpu_custom_call.1} parent=31 // pred_check
          %p231 = pneg %p104
        $region38: #{tpu_custom_call.1} parent=31 // pred_check_branch
          %233 = sbr.rel (%p231) target = $region40
        $region39: #{tpu_custom_call.1} parent=31 // pred_region
          %235 = vsyncadd %s227, 0
          %s236 = smul.addr %s18, 8
          %s237 = scalar_lea.hbm %s3, %s236
          %s239 = sshll.u32 %s230, 4
          %s240 = int_to_ptr.vmem [resolvable:$true] %s239
          %s241 = sshll.u32 %s237, 4
          %s242 = int_to_ptr.hbm [resolvable:$true] %s241
          %244 = dma.vmem_to_hbm [thread:$0]  %s240, 128, %s242, %s227
        $region40: #{tpu_custom_call.1} parent=31 // pred_fallthru
          _
      $region32: #{tpu_custom_call.1} parent=5 // pred_fallthru
        _
      %p245 = scmp.le.s32.totalorder 2, %s13
      // Predicated region
      $region41: #{tpu_custom_call.1} parent=5 // pred_check
        %p246 = pneg %p245
      $region42: #{tpu_custom_call.1} parent=5 // pred_check_branch
        %248 = sbr.rel (%p246) target = $region44
      $region43: #{tpu_custom_call.1} parent=5 // pred_region
        %s249 = ssub.s32 %s13, 2
        // Predicated region
        $region45: #{tpu_custom_call.1} parent=43 // pred_check
          %p250 = pneg %p110
        $region46: #{tpu_custom_call.1} parent=43 // pred_check_branch
          %252 = sbr.rel (%p250) target = $region48
        $region47: #{tpu_custom_call.1} parent=43 // pred_region
          %s253 = sand.u32 %s95, 1
          %s254 = scalar_lea.sflag [#allocation4], %s253
          %s255 = sand.u32 %s95, 1
          %s256 = smul.addr %s255, 8
          %s257 = scalar_lea.vmem [#allocation5], %s256
          %259 = dma.done %s254, 128
        $region48: #{tpu_custom_call.1} parent=43 // pred_fallthru
          _
      $region44: #{tpu_custom_call.1} parent=5 // pred_fallthru
        _
    $region6: #{tpu_custom_call.1} parent=1 // loop_footer
      %s17 = sadd.s32 1, %s13
    $region7: #{tpu_custom_call.1} parent=1 // loop_footer_branch
      %12 = sbr.rel target = $region3
    $region8: #{tpu_custom_call.1} parent=1 // loop_exit
      _
    %260 = vsyncpa [#allocation3], 1
    %s261 = scalar_lea.sflag [#allocation3], 1
    %262 = vsyncpa %s261, 1
    %263 = vsyncpa [#allocation4], 1
    %s264 = scalar_lea.sflag [#allocation4], 1
    %265 = vsyncpa %s264, 1

</llo_original>
